<compile_context>
chip_gen: v5e
topology: v5e:2x2
jax: 0.10.0
libtpu: 0.0.40
codegen_flags: <defaults>
</compile_context>

<pallas_src>
import jax
import jax.numpy as jnp
from jax import lax
from jax.experimental import pallas as pl
from jax.experimental.pallas import tpu as pltpu


def _round_up(x: int, m: int) -> int:
    return ((x + m - 1) // m) * m


def _vmem_limit_bytes() -> int:
    """Generation-aware scoped-VMEM limit: ~3/4 of physical VMEM.

    -> ~96 MiB on v5e/v6e (128 MiB physical), ~48 MiB on v7x (64 MiB/TC).
    """
    cap = 128 * 1024 * 1024
    try:
        cap = int(pltpu.get_tpu_info().vmem_capacity_bytes)
    except Exception:
        pass
    return int(cap * 3 // 4)


def _choose_tm(m: int, n_pad: int, b_pad: int, n_slices: int,
               vmem_limit: int) -> int:
    """Largest multiple of 256 for the A M-tile such that the double-buffered
    bf16 A tiles plus the resident X (bf16) and out (f32) buffers fit in the
    VMEM budget, capped so M is not over-padded."""
    # Conservative: count X and out as double-buffered, plus Mosaic headroom.
    resident = 2 * b_pad * n_pad * 2 + 2 * b_pad * n_pad * 4
    headroom = 8 * 1024 * 1024
    a_budget = vmem_limit - resident - headroom
    per_row_bytes = 2 * n_pad * 2          # two bf16 buffers per tile row
    tm_budget = (a_budget // per_row_bytes) // 256 * 256 if a_budget > 0 else 0
    m_per_slice = -(-m // n_slices)        # ceil div
    tm_need = _round_up(max(m_per_slice, 1), 256)
    return max(256, min(max(tm_budget, 256), tm_need))


def _op_adjoint_op_kernel(x_ref, a_ref, o_ref):
    # x_ref: (B_pad, N_pad) bf16  flattened input images (resident)
    # a_ref: (TM,    N_pad) bf16  current M-tile of the forward operator
    # o_ref: (B_pad, N_pad) f32   partial A_c^T A_c x for this core slice
    #                             (resident; doubles as the accumulator)
    m = pl.program_id(1)

    @pl.when(m == 0)
    def _():
        o_ref[...] = jnp.zeros_like(o_ref)

    x = x_ref[...]
    a_tile = a_ref[...]

    # forward op on this tile:  Y_m = X @ A_m^T   (contract over N, no A^T copy)
    y = lax.dot_general(
        x, a_tile,
        dimension_numbers=(((1,), (1,)), ((), ())),
        preferred_element_type=jnp.float32,
    )  # (B_pad, TM) f32

    # adjoint contribution:  acc += Y_m @ A_m   (contract over TM)
    # NOTE: y is rounded to bf16 for the MXU; f32 accumulation keeps the
    # overall error at the bf16-input level (tolerance below reflects this).
    o_ref[...] += lax.dot_general(
        y.astype(jnp.bfloat16), a_tile,
        dimension_numbers=(((1,), (0,)), ((), ())),
        preferred_element_type=jnp.float32,
    )


class ApproxFn:
    """out = A^T (A x) for a dense linear forward operator A, x: (B, H, W)."""

    def __init__(self, a: jax.Array, batch_size: int):
        M, N = a.shape
        self.m, self.n = M, N
        self.n_pad = _round_up(N, 128)                    # lane padding
        self.b_pad = _round_up(max(batch_size, 16), 16)   # bf16 sublane pad
        self.n_slices = 2    # split the M reduction across TCs on v7x;
                             # harmless extra outer iteration on 1-TC chips
        self.vmem_limit = _vmem_limit_bytes()
        self.tm = _choose_tm(M, self.n_pad, self.b_pad, self.n_slices,
                             self.vmem_limit)
        self.m_pad = _round_up(M, self.n_slices * self.tm)
        self.inner_steps = self.m_pad // (self.n_slices * self.tm)
        # One-time pad + bf16 cast of A (hoisted out of the per-call path).
        # Zero-padded rows/cols contribute nothing to A^T A, so it is exact.
        self.a_p = jnp.zeros((self.m_pad, self.n_pad), jnp.bfloat16
                             ).at[:M, :N].set(a.astype(jnp.bfloat16))

    def __call__(self, x_nhw: jax.Array) -> jax.Array:
        B, H, W = x_nhw.shape
        N = H * W
        assert N == self.n and B <= self.b_pad
        out_dtype = x_nhw.dtype

        b_pad, n_pad = self.b_pad, self.n_pad
        tm, ns, inner = self.tm, self.n_slices, self.inner_steps

        x_p = jnp.zeros((b_pad, n_pad), jnp.bfloat16
                        ).at[:B, :N].set(x_nhw.reshape(B, N).astype(jnp.bfloat16))

        out_p = pl.pallas_call(
            _op_adjoint_op_kernel,
            out_shape=jax.ShapeDtypeStruct((ns, b_pad, n_pad), jnp.float32),
            grid_spec=pltpu.PrefetchScalarGridSpec(
                num_scalar_prefetch=0,
                grid=(ns, inner),
                in_specs=[
                    # X resident across the whole grid
                    pl.BlockSpec((b_pad, n_pad), lambda c, m: (0, 0)),
                    # A streamed: core-slice c handles rows [c*inner, (c+1)*inner)
                    pl.BlockSpec((tm, n_pad), lambda c, m: (c * inner + m, 0)),
                ],
                # one partial result per core slice; resident across the
                # reduction axis (accumulator), written back per slice
                out_specs=pl.BlockSpec((None, b_pad, n_pad),
                                       lambda c, m: (c, 0, 0)),
            ),
            compiler_params=pltpu.CompilerParams(
                dimension_semantics=("parallel", "arbitrary"),
                vmem_limit_bytes=self.vmem_limit,
            ),
            cost_estimate=pl.CostEstimate(
                flops=4 * b_pad * self.m_pad * n_pad,
                transcendentals=0,
                bytes_accessed=(self.m_pad * n_pad * 2       # A (bf16)
                                + b_pad * n_pad * 2          # X (bf16)
                                + ns * b_pad * n_pad * 4),   # partial outs
            ),
        )(x_p, self.a_p)

        # Tiny cross-core partial sum, then un-pad.
        out = out_p.sum(axis=0)[:B, :N]
        return out.astype(out_dtype).reshape(B, H, W)


if __name__ == "__main__":
    key = jax.random.PRNGKey(0)
    k_x, k_a = jax.random.split(key)

    # Small shapes consistent with the module: batch of 2 images, 16x16,
    # synthetic linear operator with a data-domain size that exercises the
    # M-tiled / two-core-slice streaming path.
    B, H, W = 2, 16, 16
    N = H * W        # image-domain size (flattened)
    M = 512          # data-domain size of the synthetic linear operator

    x = jax.random.normal(k_x, (B, H, W), dtype=jnp.float32)
    a = jax.random.normal(k_a, (M, N), dtype=jnp.float32) / jnp.sqrt(N)

    model = ApproxFn(a, batch_size=B)   # A padded/cast to bf16 exactly once
    out = model(x)
    jax.block_until_ready(out)
    assert out.shape == x.shape

    # Reference check against plain JAX f32 (A^T A x); kernel uses bf16 MXU
    # inputs with f32 accumulation, so tolerance reflects bf16 rounding.
    ref = (x.reshape(B, N) @ a.T @ a).reshape(B, H, W)
    assert jnp.allclose(out, ref, atol=1e-1, rtol=1e-1), (
        float(jnp.max(jnp.abs(out - ref))))

    print("KERNEL_OK")
</pallas_src>

<mosaic_0001>
module attributes {stable_mosaic.version = 11 : i64} {
  func.func @_op_adjoint_op_kernel(%arg0: i32, %arg1: i32, %arg2: memref<16x256xbf16, #tpu.memory_space<vmem>>, %arg3: memref<256x256xbf16, #tpu.memory_space<vmem>>, %arg4: memref<1x16x256xf32, #tpu.memory_space<vmem>>) attributes {dimension_semantics = [#tpu.dimension_semantics<parallel>, #tpu.dimension_semantics<arbitrary>], iteration_bounds = array<i64: 2, 1>, scalar_prefetch = 0 : i64, scratch_operands = 0 : i64, tpu.core_type = #tpu.core_type<tc>, window_params = [{pipeline_mode = #tpu.pipeline_mode<synchronous>, transform_indices = @transform_0, window_bounds = array<i64: 16, 256>}, {transform_indices = @transform_1, window_bounds = array<i64: 256, 256>}, {transform_indices = @transform_2, window_bounds = array<i64: 1, 16, 256>}]} {
    %c0_i32 = arith.constant 0 : i32
    %0 = arith.cmpi eq, %arg1, %c0_i32 : i32
    %1 = arith.extui %0 : i1 to i32
    %c0_i32_0 = arith.constant 0 : i32
    %2 = arith.cmpi ne, %1, %c0_i32_0 : i32
    scf.if %2 {
      %cst_11 = arith.constant 0.000000e+00 : f32
      %14 = vector.broadcast %cst_11 : f32 to vector<16x256xf32>
      %c0_12 = arith.constant 0 : index
      %c0_13 = arith.constant 0 : index
      %c0_14 = arith.constant 0 : index
      %15 = vector.load %arg4[%c0_12, %c0_13, %c0_14] : memref<1x16x256xf32, #tpu.memory_space<vmem>>, vector<1x16x256xf32>
      %16 = vector.shape_cast %15 : vector<1x16x256xf32> to vector<16x256xf32>
      %17 = vector.shape_cast %14 : vector<16x256xf32> to vector<1x16x256xf32>
      tpu.vector_store %arg4[%c0_12, %c0_13, %c0_14], %17 {strides = array<i32>} : memref<1x16x256xf32, #tpu.memory_space<vmem>>, vector<1x16x256xf32>,
    } else {
    }
    %c0 = arith.constant 0 : index
    %c0_1 = arith.constant 0 : index
    %3 = vector.load %arg2[%c0, %c0_1] : memref<16x256xbf16, #tpu.memory_space<vmem>>, vector<16x256xbf16>
    %c0_2 = arith.constant 0 : index
    %c0_3 = arith.constant 0 : index
    %4 = vector.load %arg3[%c0_2, %c0_3] : memref<256x256xbf16, #tpu.memory_space<vmem>>, vector<256x256xbf16>
    %cst = arith.constant dense<0.000000e+00> : vector<16x256xf32>
    %5 = tpu.matmul %3, %4, %cst {dimension_numbers = #tpu.dot_dimension_numbers<[1], [1], [0], [0], [0, 0, 1, 0], [], []>} : vector<16x256xbf16>, vector<256x256xbf16>, vector<16x256xf32> -> vector<16x256xf32>
    %c0_4 = arith.constant 0 : index
    %c0_5 = arith.constant 0 : index
    %c0_6 = arith.constant 0 : index
    %6 = vector.load %arg4[%c0_4, %c0_5, %c0_6] : memref<1x16x256xf32, #tpu.memory_space<vmem>>, vector<1x16x256xf32>
    %7 = vector.shape_cast %6 : vector<1x16x256xf32> to vector<16x256xf32>
    %8 = arith.truncf %5 : vector<16x256xf32> to vector<16x256xbf16>
    %cst_7 = arith.constant dense<0.000000e+00> : vector<16x256xf32>
    %9 = tpu.matmul %8, %4, %cst_7 {dimension_numbers = #tpu.dot_dimension_numbers<[1], [0], [0], [1], [0, 0, 1, 1], [], []>} : vector<16x256xbf16>, vector<256x256xbf16>, vector<16x256xf32> -> vector<16x256xf32>
    %10 = arith.addf %7, %9 : vector<16x256xf32>
    %c0_8 = arith.constant 0 : index
    %c0_9 = arith.constant 0 : index
    %c0_10 = arith.constant 0 : index
    %11 = vector.load %arg4[%c0_8, %c0_9, %c0_10] : memref<1x16x256xf32, #tpu.memory_space<vmem>>, vector<1x16x256xf32>
    %12 = vector.shape_cast %11 : vector<1x16x256xf32> to vector<16x256xf32>
    %13 = vector.shape_cast %10 : vector<16x256xf32> to vector<1x16x256xf32>
    tpu.vector_store %arg4[%c0_8, %c0_9, %c0_10], %13 {strides = array<i32>} : memref<1x16x256xf32, #tpu.memory_space<vmem>>, vector<1x16x256xf32>,
    return
  }
  func.func @transform_0(%arg0: i32, %arg1: i32) -> (i32, i32) {
    %c0_i32 = arith.constant 0 : i32
    %c0_i32_0 = arith.constant 0 : i32
    %c0_i32_1 = arith.constant 0 : i32
    return %c0_i32, %c0_i32_0 : i32, i32
  }
  func.func @transform_1(%arg0: i32, %arg1: i32) -> (i32, i32) {
    %c1_i32 = arith.constant 1 : i32
    %0 = arith.muli %arg0, %c1_i32 : i32
    %1 = arith.addi %0, %arg1 : i32
    %c0_i32 = arith.constant 0 : i32
    %c0_i32_0 = arith.constant 0 : i32
    return %1, %c0_i32 : i32, i32
  }
  func.func @transform_2(%arg0: i32, %arg1: i32) -> (i32, i32, i32) {
    %c0_i32 = arith.constant 0 : i32
    %c0_i32_0 = arith.constant 0 : i32
    %c0_i32_1 = arith.constant 0 : i32
    return %arg0, %c0_i32, %c0_i32_0 : i32, i32, i32
  }
}

</mosaic_0001>

<llo_original>
// kernel: tpu_custom_call.1
$region0: #{tpu_custom_call.1}
  #allocation0 [shape = 'u32[]', space=smem, size = 0x4, offset = 0x4, fixed_abs, tag = 'smem constant byte address 0x4 - core index']
  #allocation1 [shape = 'u32[72,128]{1,0:T(1,128)}', space=vmem, size = 0x9000, scoped, tag = 'internal scratch']
  %s0 = inlined_call_operand.hbm [shape: bf16[16,256], index: 0, kind: input, shape index: {}]
  %s1 = inlined_call_operand.hbm [shape: bf16[512,256], index: 1, kind: input, shape index: {}]
  %s2 = inlined_call_operand.hbm [shape: f32[2,16,256], index: 2, kind: output, shape index: {}]
  %s3 = sld [smem:[#allocation0]]
  $region53: #{tpu_custom_call.1} parent=0
    _
  %s5 = ssub.s32 1, %s3
  %s6 = scalar_select 0, %s5, %s3
  $region1: #{tpu_custom_call.1} parent=0
    #allocation2 [shape = 'u8[8192]{0}', space=vmem, size = 0x2000, scoped, tag = 'input window, operand 0, single buffered']
    #allocation3 [shape = 's32[2]{0}', space=sflag, size = 0x8, scoped, tag = 'scoped memory for tpu_custom_call.1']
    #allocation4 [shape = 's32[2]{0}', space=sflag, size = 0x8, scoped, tag = 'scoped memory for tpu_custom_call.1']
    #allocation5 [shape = 'u8[262144]{0}', space=vmem, size = 0x40000, scoped, tag = 'input window, operand 1']
    #allocation6 [shape = 's32[2]{0}', space=sflag, size = 0x8, scoped, tag = 'scoped memory for tpu_custom_call.1']
    #allocation7 [shape = 'u8[32768]{0}', space=vmem, size = 0x8000, scoped, tag = 'output window, operand 0']
    %7 = vsyncpa [#allocation3], 0
    %8 = vsyncpa [#allocation6], 0
    %s9 = scalar_lea.sflag [#allocation6], 1
    %10 = vsyncpa %s9, 0
    %11 = vsyncpa [#allocation4], 0
    %s12 = scalar_lea.sflag [#allocation4], 1
    %13 = vsyncpa %s12, 0
    loop: start=0, step=1, limit=4
    $region2: #{tpu_custom_call.1} parent=1 // loop_pre_header
      _
    $region3: #{tpu_custom_call.1} parent=1 // loop_header
      %s15 = sphi 0, %s19
      %p16 = scmp.ge.s32.totalorder %s15, 4
      %s22 = sphi 0, %s34
      %s23 = sphi 0, %s30
      %s24 = sphi 0, %s22
      %s25 = sphi 0, %s23
      %s26 = sphi 0, %s24
      %s27 = sphi 0, %s25
      %s35 = sphi 0, %s35
      %s37 = sphi 0, %s35
      %s38 = sphi 0, %s37
      %s52 = sphi 0, %s38
      %s60 = sphi 0, %s62
      %s63 = sphi 0, %s60
      %s64 = sphi 0, %s63
      %s80 = sphi 0, %s64
      %s86 = sphi 0, %s88
      %s89 = sphi 0, %s86
      %s90 = sphi 0, %s89
      %s106 = sphi 0, %s90
    $region4: #{tpu_custom_call.1} parent=1 // loop_header_branch
      %18 = sbr.rel (%p16) target = $region8
    $region5: #{tpu_custom_call.1} parent=1 // loop_body
      %s20 = ssub.s32 %s15, 1
      %s21 = ssub.s32 %s15, 2
      %s28 = sadd.s32 1, %s23
      %p29 = scmp.ge.s32.totalorder %s28, 1
      %s30 = scalar_select %p29, 0, %s28
      %s31 = sadd.s32 1, %s22
      %s32 = scalar_select %p29, %s31, %s22
      %p33 = scmp.ge.s32.totalorder %s32, 2
      %s34 = scalar_select %p33, 0, %s32
      %s36 = sadd.s32 %s35, 1
      %p39 = scmp.eq.s32.totalorder %s15, 1
      %p40 = scmp.ne.s32.totalorder %s35, %s37
      %p41 = scmp.eq.s32.totalorder %s15, 0
      %p42 = por %p40, %p41
      %p43 = scmp.ne.s32.totalorder %s35, %s37
      %p44 = scmp.eq.s32.totalorder %s20, 1
      %p45 = por %p43, %p44
      %p46 = scmp.ne.s32.totalorder %s37, %s38
      %p47 = scmp.eq.s32.totalorder %s20, 0
      %p48 = por %p46, %p47
      %p49 = scmp.ne.s32.totalorder %s37, %s38
      %p50 = scmp.eq.s32.totalorder %s21, 1
      %p51 = por %p49, %p50
      %p53 = scmp.ne.s32.totalorder %s38, %s52
      %p54 = scmp.eq.s32.totalorder %s21, 0
      %p55 = por %p53, %p54
      %s56 = sadd.s32 %s22, %s23
      %s57 = sadd.s32 %s34, %s30
      %s58 = ssub.s32 %s56, %s57
      %p59 = scmp.eq.s32.totalorder %s58, 0
      %s61 = sadd.s32 %s60, 1
      %s62 = scalar_select %p59, %s60, %s61
      %p65 = pneg %p59
      %p66 = scmp.eq.s32.totalorder %s15, 1
      %p67 = por %p65, %p66
      %p68 = scmp.ne.s32.totalorder %s60, %s63
      %p69 = scmp.eq.s32.totalorder %s15, 0
      %p70 = por %p68, %p69
      %p71 = scmp.ne.s32.totalorder %s60, %s63
      %p72 = scmp.eq.s32.totalorder %s20, 1
      %p73 = por %p71, %p72
      %p74 = scmp.ne.s32.totalorder %s63, %s64
      %p75 = scmp.eq.s32.totalorder %s20, 0
      %p76 = por %p74, %p75
      %p77 = scmp.ne.s32.totalorder %s63, %s64
      %p78 = scmp.eq.s32.totalorder %s21, 1
      %p79 = por %p77, %p78
      %p81 = scmp.ne.s32.totalorder %s64, %s80
      %p82 = scmp.eq.s32.totalorder %s21, 0
      %p83 = por %p81, %p82
      %s84 = ssub.s32 %s22, %s34
      %p85 = scmp.eq.s32.totalorder %s84, 0
      %s87 = sadd.s32 %s86, 1
      %s88 = scalar_select %p85, %s86, %s87
      %p91 = pneg %p85
      %p92 = scmp.eq.s32.totalorder %s15, 1
      %p93 = por %p91, %p92
      %p94 = scmp.ne.s32.totalorder %s86, %s89
      %p95 = scmp.eq.s32.totalorder %s15, 0
      %p96 = por %p94, %p95
      %p97 = scmp.ne.s32.totalorder %s86, %s89
      %p98 = scmp.eq.s32.totalorder %s20, 1
      %p99 = por %p97, %p98
      %p100 = scmp.ne.s32.totalorder %s89, %s90
      %p101 = scmp.eq.s32.totalorder %s20, 0
      %p102 = por %p100, %p101
      %p103 = scmp.ne.s32.totalorder %s89, %s90
      %p104 = scmp.eq.s32.totalorder %s21, 1
      %p105 = por %p103, %p104
      %p107 = scmp.ne.s32.totalorder %s90, %s106
      %p108 = scmp.eq.s32.totalorder %s21, 0
      %p109 = por %p107, %p108
      %p110 = scmp.le.s32.totalorder 1, %s15
      %p111 = scmp.lt.s32.totalorder %s15, 3
      %p112 = pnand %p110, %p111
      %p113 = pneg %p112
      // Predicated region
      $region9: #{tpu_custom_call.1} parent=5 // pred_check
        _
      $region10: #{tpu_custom_call.1} parent=5 // pred_check_branch
        %115 = sbr.rel (%p112) target = $region12
      $region11: #{tpu_custom_call.1} parent=5 // pred_region
        %s116 = ssub.s32 %s15, 1
        // Predicated region
        $region13: #{tpu_custom_call.1} parent=11 // pred_check
          %p117 = pneg %p48
        $region14: #{tpu_custom_call.1} parent=11 // pred_check_branch
          %119 = sbr.rel (%p117) target = $region16
        $region15: #{tpu_custom_call.1} parent=11 // pred_region
          %121 = vsyncadd [#allocation3], 0
          %s122 = sshll.u32 %s0, 4
          %s123 = int_to_ptr.hbm [resolvable:$true] %s122
          %s124 = sshll.u32 [#allocation2], 4
          %s125 = int_to_ptr.vmem [resolvable:$true] %s124
          %130 = dma.hbm_to_vmem [thread:$0]  %s123, 256, %s125, [#allocation3], 128, 128, 8
        $region16: #{tpu_custom_call.1} parent=11 // pred_fallthru
          _
      $region12: #{tpu_custom_call.1} parent=5 // pred_fallthru
        _
      %p131 = scmp.lt.s32.totalorder %s15, 2
      // Predicated region
      $region17: #{tpu_custom_call.1} parent=5 // pred_check
        %p132 = pneg %p131
      $region18: #{tpu_custom_call.1} parent=5 // pred_check_branch
        %134 = sbr.rel (%p132) target = $region20
      $region19: #{tpu_custom_call.1} parent=5 // pred_region
        // Predicated region
        $region21: #{tpu_custom_call.1} parent=19 // pred_check
          %p135 = pneg %p70
        $region22: #{tpu_custom_call.1} parent=19 // pred_check_branch
          %137 = sbr.rel (%p135) target = $region24
        $region23: #{tpu_custom_call.1} parent=19 // pred_region
          %s138 = sand.u32 %s60, 1
          %s139 = scalar_lea.sflag [#allocation6], %s138
          %s140 = sand.u32 %s60, 1
          %s141 = smul.addr %s140, 256
          %s142 = scalar_lea.vmem [#allocation5], %s141
          %s143 = sadd.s32 %s22, %s23
          %s144 = smul.u32 32, %s143
          %146 = vsyncadd %s139, 0
          %s147 = smul.addr %s144, 2
          %s148 = smul.addr %s147, 4
          %s149 = scalar_lea.hbm %s1, %s148
          %s150 = sshll.u32 %s149, 4
          %s151 = int_to_ptr.hbm [resolvable:$true] %s150
          %s152 = sshll.u32 %s142, 4
          %s153 = int_to_ptr.vmem [resolvable:$true] %s152
          %158 = dma.hbm_to_vmem [thread:$0]  %s151, 4096, %s153, %s139, 128, 128, 8
        $region24: #{tpu_custom_call.1} parent=19 // pred_fallthru
          _
      $region20: #{tpu_custom_call.1} parent=5 // pred_fallthru
        _
      %p159 = scmp.le.s32.totalorder 1, %s15
      %p160 = scmp.lt.s32.totalorder %s15, 3
      %p161 = pnand %p159, %p160
      %p162 = pneg %p161
      // Predicated region
      $region25: #{tpu_custom_call.1} parent=5 // pred_check
        _
      $region26: #{tpu_custom_call.1} parent=5 // pred_check_branch
        %164 = sbr.rel (%p161) target = $region28
      $region27: #{tpu_custom_call.1} parent=5 // pred_region
        %s165 = ssub.s32 %s15, 1
        // Predicated region
        $region29: #{tpu_custom_call.1} parent=27 // pred_check
          %p166 = pneg %p48
        $region30: #{tpu_custom_call.1} parent=27 // pred_check_branch
          %168 = sbr.rel (%p166) target = $region32
        $region31: #{tpu_custom_call.1} parent=27 // pred_region
          %170 = dma.done [#allocation3], 256
        $region32: #{tpu_custom_call.1} parent=27 // pred_fallthru
          _
        %s171 = sand.u32 %s63, 1
        %s172 = scalar_lea.sflag [#allocation6], %s171
        %s173 = sand.u32 %s63, 1
        %s174 = smul.addr %s173, 256
        %s175 = scalar_lea.vmem [#allocation5], %s174
        // Predicated region
        $region33: #{tpu_custom_call.1} parent=27 // pred_check
          %p176 = pneg %p76
        $region34: #{tpu_custom_call.1} parent=27 // pred_check_branch
          %178 = sbr.rel (%p176) target = $region36
        $region35: #{tpu_custom_call.1} parent=27 // pred_region
          %180 = dma.done %s172, 4096
        $region36: #{tpu_custom_call.1} parent=27 // pred_fallthru
          _
        %p181 = pneg %p48
        %p182 = pneg %p45
        %s183 = sand.u32 %s63, 1
        %s184 = scalar_lea.sflag [#allocation6], %s183
        %s185 = sand.u32 %s63, 1
        %s186 = smul.addr %s185, 256
        %s187 = scalar_lea.vmem [#allocation5], %s186
        %p188 = pneg %p76
        %p189 = pneg %p73
        %p190 = pneg %p102
        %p191 = pneg %p99
        %s192 = sand.u32 %s89, 1
        %s193 = scalar_lea.sflag [#allocation4], %s192
        %s194 = sand.u32 %s89, 1
        %s195 = smul.addr %s194, 32
        %s196 = scalar_lea.vmem [#allocation7], %s195
        %s197 = sadd.s32 %s24, %s25
        %s198 = smul.u32 32, %s197
        %p199 = scmp.eq.s32.totalorder %s25, 0
        // Predicated region
        $region37: #{tpu_custom_call.1} parent=27 // pred_check
          %p200 = pneg %p199
        $region38: #{tpu_custom_call.1} parent=27 // pred_check_branch
          %202 = sbr.rel (%p200) target = $region40
        $region39: #{tpu_custom_call.1} parent=27 // pred_region
          %203 = vst [vmem:[%s196] sm:$0xff] 0.0
          %204 = vst [vmem:[%s196 + $0x8] sm:$0xff] 0.0
          %205 = vst [vmem:[%s196 + $0x10] sm:$0xff] 0.0
          %206 = vst [vmem:[%s196 + $0x18] sm:$0xff] 0.0
        $region40: #{tpu_custom_call.1} parent=27 // pred_fallthru
          _
        %v207 = vld [vmem:[#allocation2] sm:$0xff]
        %v208 = vld [vmem:[#allocation2 + $0x8] sm:$0xff]
        %v209 = vld [vmem:[%s175] sm:$0xff]
        %v210 = vld [vmem:[%s175 + $0x8] sm:$0xff]
        %v211 = vld [vmem:[%s175 + $0x10] sm:$0xff]
        %v212 = vld [vmem:[%s175 + $0x18] sm:$0xff]
        %v213 = vld [vmem:[%s175 + $0x20] sm:$0xff]
        %v214 = vld [vmem:[%s175 + $0x28] sm:$0xff]
        %v215 = vld [vmem:[%s175 + $0x30] sm:$0xff]
        %v216 = vld [vmem:[%s175 + $0x38] sm:$0xff]
        %v217 = vld [vmem:[%s175 + $0x40] sm:$0xff]
        %v218 = vld [vmem:[%s175 + $0x48] sm:$0xff]
        %v219 = vld [vmem:[%s175 + $0x50] sm:$0xff]
        %v220 = vld [vmem:[%s175 + $0x58] sm:$0xff]
        %v221 = vld [vmem:[%s175 + $0x60] sm:$0xff]
        %v222 = vld [vmem:[%s175 + $0x68] sm:$0xff]
        %v223 = vld [vmem:[%s175 + $0x70] sm:$0xff]
        %v224 = vld [vmem:[%s175 + $0x78] sm:$0xff]
        %v225 = vld [vmem:[%s175 + $0x80] sm:$0xff]
        %v226 = vld [vmem:[%s175 + $0x88] sm:$0xff]
        %v227 = vld [vmem:[%s175 + $0x90] sm:$0xff]
        %v228 = vld [vmem:[%s175 + $0x98] sm:$0xff]
        %v229 = vld [vmem:[%s175 + $0xa0] sm:$0xff]
        %v230 = vld [vmem:[%s175 + $0xa8] sm:$0xff]
        %v231 = vld [vmem:[%s175 + $0xb0] sm:$0xff]
        %v232 = vld [vmem:[%s175 + $0xb8] sm:$0xff]
        %v233 = vld [vmem:[%s175 + $0xc0] sm:$0xff]
        %v234 = vld [vmem:[%s175 + $0xc8] sm:$0xff]
        %v235 = vld [vmem:[%s175 + $0xd0] sm:$0xff]
        %v236 = vld [vmem:[%s175 + $0xd8] sm:$0xff]
        %v237 = vld [vmem:[%s175 + $0xe0] sm:$0xff]
        %v238 = vld [vmem:[%s175 + $0xe8] sm:$0xff]
        %v239 = vld [vmem:[%s175 + $0xf0] sm:$0xff]
        %v240 = vld [vmem:[%s175 + $0xf8] sm:$0xff]
        %v243 = vunpack.c.l.b16 %v207
        %v244 = vunpack.c.h.b16 %v207
        %v245 = vunpack.c.l.b16 %v208
        %v246 = vunpack.c.h.b16 %v208
        %v247 = vpack.c.b16 %v245, %v243
        %v248 = vpack.c.b16 %v246, %v244
        %v283 = vunpack.c.l.b16 %v209
        %v284 = vunpack.c.h.b16 %v209
        %v285 = vunpack.c.l.b16 %v210
        %v286 = vunpack.c.h.b16 %v210
        %v287 = vunpack.c.l.b16 %v211
        %v288 = vunpack.c.h.b16 %v211
        %v289 = vunpack.c.l.b16 %v212
        %v290 = vunpack.c.h.b16 %v212
        %v291 = vunpack.c.l.b16 %v213
        %v292 = vunpack.c.h.b16 %v213
        %v293 = vunpack.c.l.b16 %v214
        %v294 = vunpack.c.h.b16 %v214
        %v295 = vunpack.c.l.b16 %v215
        %v296 = vunpack.c.h.b16 %v215
        %v297 = vunpack.c.l.b16 %v216
        %v298 = vunpack.c.h.b16 %v216
        %v299 = vunpack.c.l.b16 %v217
        %v300 = vunpack.c.h.b16 %v217
        %v301 = vunpack.c.l.b16 %v218
        %v302 = vunpack.c.h.b16 %v218
        %v303 = vunpack.c.l.b16 %v219
        %v304 = vunpack.c.h.b16 %v219
        %v305 = vunpack.c.l.b16 %v220
        %v306 = vunpack.c.h.b16 %v220
        %v307 = vunpack.c.l.b16 %v221
        %v308 = vunpack.c.h.b16 %v221
        %v309 = vunpack.c.l.b16 %v222
        %v310 = vunpack.c.h.b16 %v222
        %v311 = vunpack.c.l.b16 %v223
        %v312 = vunpack.c.h.b16 %v223
        %v313 = vunpack.c.l.b16 %v224
        %v314 = vunpack.c.h.b16 %v224
        %v315 = vunpack.c.l.b16 %v225
        %v316 = vunpack.c.h.b16 %v225
        %v317 = vunpack.c.l.b16 %v226
        %v318 = vunpack.c.h.b16 %v226
        %v319 = vunpack.c.l.b16 %v227
        %v320 = vunpack.c.h.b16 %v227
        %v321 = vunpack.c.l.b16 %v228
        %v322 = vunpack.c.h.b16 %v228
        %v323 = vunpack.c.l.b16 %v229
        %v324 = vunpack.c.h.b16 %v229
        %v325 = vunpack.c.l.b16 %v230
        %v326 = vunpack.c.h.b16 %v230
        %v327 = vunpack.c.l.b16 %v231
        %v328 = vunpack.c.h.b16 %v231
        %v329 = vunpack.c.l.b16 %v232
        %v330 = vunpack.c.h.b16 %v232
        %v331 = vunpack.c.l.b16 %v233
        %v332 = vunpack.c.h.b16 %v233
        %v333 = vunpack.c.l.b16 %v234
        %v334 = vunpack.c.h.b16 %v234
        %v335 = vunpack.c.l.b16 %v235
        %v336 = vunpack.c.h.b16 %v235
        %v337 = vunpack.c.l.b16 %v236
        %v338 = vunpack.c.h.b16 %v236
        %v339 = vunpack.c.l.b16 %v237
        %v340 = vunpack.c.h.b16 %v237
        %v341 = vunpack.c.l.b16 %v238
        %v342 = vunpack.c.h.b16 %v238
        %v343 = vunpack.c.l.b16 %v239
        %v344 = vunpack.c.h.b16 %v239
        %v345 = vunpack.c.l.b16 %v240
        %v346 = vunpack.c.h.b16 %v240
        %v347 = vpack.c.b16 %v285, %v283
        %v348 = vpack.c.b16 %v286, %v284
        %v349 = vpack.c.b16 %v289, %v287
        %v350 = vpack.c.b16 %v290, %v288
        %v351 = vpack.c.b16 %v293, %v291
        %v352 = vpack.c.b16 %v294, %v292
        %v353 = vpack.c.b16 %v297, %v295
        %v354 = vpack.c.b16 %v298, %v296
        %v355 = vpack.c.b16 %v301, %v299
        %v356 = vpack.c.b16 %v302, %v300
        %v357 = vpack.c.b16 %v305, %v303
        %v358 = vpack.c.b16 %v306, %v304
        %v359 = vpack.c.b16 %v309, %v307
        %v360 = vpack.c.b16 %v310, %v308
        %v361 = vpack.c.b16 %v313, %v311
        %v362 = vpack.c.b16 %v314, %v312
        %v363 = vpack.c.b16 %v317, %v315
        %v364 = vpack.c.b16 %v318, %v316
        %v365 = vpack.c.b16 %v321, %v319
        %v366 = vpack.c.b16 %v322, %v320
        %v367 = vpack.c.b16 %v325, %v323
        %v368 = vpack.c.b16 %v326, %v324
        %v369 = vpack.c.b16 %v329, %v327
        %v370 = vpack.c.b16 %v330, %v328
        %v371 = vpack.c.b16 %v333, %v331
        %v372 = vpack.c.b16 %v334, %v332
        %v373 = vpack.c.b16 %v337, %v335
        %v374 = vpack.c.b16 %v338, %v336
        %v375 = vpack.c.b16 %v341, %v339
        %v376 = vpack.c.b16 %v342, %v340
        %v377 = vpack.c.b16 %v345, %v343
        %v378 = vpack.c.b16 %v346, %v344
        %411 = vmatpush.bf16.xpose.msra.mxu0 %v361
        %412 = vmatpush.bf16.xpose.msra.mxu0 %v359
        %413 = vmatpush.bf16.xpose.msra.mxu0 %v357
        %414 = vmatpush.bf16.xpose.msra.mxu0 %v355
        %415 = vmatpush.bf16.xpose.msra.mxu0 %v353
        %416 = vmatpush.bf16.xpose.msra.mxu0 %v351
        %417 = vmatpush.bf16.xpose.msra.mxu0 %v349
        %418 = vmatpush.bf16.xpose.msra.mxu0 %v347
        %419 = vmatmul.bf16.gmra.mxu0 %v247
        %v420 = vpop.f32.mrf.mxu0
        %v421 = vadd.f32 0.0, %v420
        %v422 = vpop.f32.mrf.mxu0
        %v423 = vadd.f32 0.0, %v422
        %424 = vdwg.mxu0
        %425 = vmatpush.bf16.xpose.msra.mxu0 %v362
        %426 = vmatpush.bf16.xpose.msra.mxu0 %v360
        %427 = vmatpush.bf16.xpose.msra.mxu0 %v358
        %428 = vmatpush.bf16.xpose.msra.mxu0 %v356
        %429 = vmatpush.bf16.xpose.msra.mxu0 %v354
        %430 = vmatpush.bf16.xpose.msra.mxu0 %v352
        %431 = vmatpush.bf16.xpose.msra.mxu0 %v350
        %432 = vmatpush.bf16.xpose.msra.mxu0 %v348
        %433 = vmatmul.bf16.gmra.mxu0 %v248
        %v434 = vpop.f32.mrf.mxu0
        %v435 = vadd.f32 %v421, %v434
        %v436 = vpop.f32.mrf.mxu0
        %v437 = vadd.f32 %v423, %v436
        %438 = vdwg.mxu0
        %439 = vmatpush.bf16.xpose.msra.mxu0 %v377
        %440 = vmatpush.bf16.xpose.msra.mxu0 %v375
        %441 = vmatpush.bf16.xpose.msra.mxu0 %v373
        %442 = vmatpush.bf16.xpose.msra.mxu0 %v371
        %443 = vmatpush.bf16.xpose.msra.mxu0 %v369
        %444 = vmatpush.bf16.xpose.msra.mxu0 %v367
        %445 = vmatpush.bf16.xpose.msra.mxu0 %v365
        %446 = vmatpush.bf16.xpose.msra.mxu0 %v363
        %447 = vmatmul.bf16.gmra.mxu0 %v247
        %v448 = vpop.f32.mrf.mxu0
        %v449 = vadd.f32 0.0, %v448
        %v450 = vpop.f32.mrf.mxu0
        %v451 = vadd.f32 0.0, %v450
        %452 = vdwg.mxu0
        %453 = vmatpush.bf16.xpose.msra.mxu0 %v378
        %454 = vmatpush.bf16.xpose.msra.mxu0 %v376
        %455 = vmatpush.bf16.xpose.msra.mxu0 %v374
        %456 = vmatpush.bf16.xpose.msra.mxu0 %v372
        %457 = vmatpush.bf16.xpose.msra.mxu0 %v370
        %458 = vmatpush.bf16.xpose.msra.mxu0 %v368
        %459 = vmatpush.bf16.xpose.msra.mxu0 %v366
        %460 = vmatpush.bf16.xpose.msra.mxu0 %v364
        %461 = vmatmul.bf16.gmra.mxu0 %v248
        %v462 = vpop.f32.mrf.mxu0
        %v463 = vadd.f32 %v449, %v462
        %v464 = vpop.f32.mrf.mxu0
        %v465 = vadd.f32 %v451, %v464
        %466 = vdwg.mxu0
        %v467 = vld [vmem:[%s196] sm:$0xff]
        %v468 = vld [vmem:[%s196 + $0x8] sm:$0xff]
        %v469 = vld [vmem:[%s196 + $0x10] sm:$0xff]
        %v470 = vld [vmem:[%s196 + $0x18] sm:$0xff]
        %v471 = vpack.c.bf16 %v437, %v435
        %v472 = vpack.c.bf16 %v465, %v463
        %473 = vmatpush.bf16.msra.mxu0 %v361
        %474 = vmatpush.bf16.msra.mxu0 %v359
        %475 = vmatpush.bf16.msra.mxu0 %v357
        %476 = vmatpush.bf16.msra.mxu0 %v355
        %477 = vmatpush.bf16.msra.mxu0 %v353
        %478 = vmatpush.bf16.msra.mxu0 %v351
        %479 = vmatpush.bf16.msra.mxu0 %v349
        %480 = vmatpush.bf16.msra.mxu0 %v347
        %481 = vmatmul.bf16.gmra.mxu0 %v471
        %v482 = vpop.f32.mrf.mxu0
        %v483 = vadd.f32 0.0, %v482
        %v484 = vpop.f32.mrf.mxu0
        %v485 = vadd.f32 0.0, %v484
        %486 = vdwg.mxu0
        %487 = vmatpush.bf16.msra.mxu0 %v377
        %488 = vmatpush.bf16.msra.mxu0 %v375
        %489 = vmatpush.bf16.msra.mxu0 %v373
        %490 = vmatpush.bf16.msra.mxu0 %v371
        %491 = vmatpush.bf16.msra.mxu0 %v369
        %492 = vmatpush.bf16.msra.mxu0 %v367
        %493 = vmatpush.bf16.msra.mxu0 %v365
        %494 = vmatpush.bf16.msra.mxu0 %v363
        %495 = vmatmul.bf16.gmra.mxu0 %v472
        %v496 = vpop.f32.mrf.mxu0
        %v497 = vadd.f32 %v483, %v496
        %v498 = vpop.f32.mrf.mxu0
        %v499 = vadd.f32 %v485, %v498
        %500 = vdwg.mxu0
        %501 = vmatpush.bf16.msra.mxu0 %v362
        %502 = vmatpush.bf16.msra.mxu0 %v360
        %503 = vmatpush.bf16.msra.mxu0 %v358
        %504 = vmatpush.bf16.msra.mxu0 %v356
        %505 = vmatpush.bf16.msra.mxu0 %v354
        %506 = vmatpush.bf16.msra.mxu0 %v352
        %507 = vmatpush.bf16.msra.mxu0 %v350
        %508 = vmatpush.bf16.msra.mxu0 %v348
        %509 = vmatmul.bf16.gmra.mxu0 %v471
        %v510 = vpop.f32.mrf.mxu0
        %v511 = vadd.f32 0.0, %v510
        %v512 = vpop.f32.mrf.mxu0
        %v513 = vadd.f32 0.0, %v512
        %514 = vdwg.mxu0
        %515 = vmatpush.bf16.msra.mxu0 %v378
        %516 = vmatpush.bf16.msra.mxu0 %v376
        %517 = vmatpush.bf16.msra.mxu0 %v374
        %518 = vmatpush.bf16.msra.mxu0 %v372
        %519 = vmatpush.bf16.msra.mxu0 %v370
        %520 = vmatpush.bf16.msra.mxu0 %v368
        %521 = vmatpush.bf16.msra.mxu0 %v366
        %522 = vmatpush.bf16.msra.mxu0 %v364
        %523 = vmatmul.bf16.gmra.mxu0 %v472
        %v524 = vpop.f32.mrf.mxu0
        %v525 = vadd.f32 %v511, %v524
        %v526 = vpop.f32.mrf.mxu0
        %v527 = vadd.f32 %v513, %v526
        %528 = vdwg.mxu0
        %v529 = vadd.f32 %v467, %v497
        %v530 = vadd.f32 %v468, %v525
        %v531 = vadd.f32 %v469, %v499
        %v532 = vadd.f32 %v470, %v527
        %533 = vst [vmem:[%s196] sm:$0xff] %v529
        %534 = vst [vmem:[%s196 + $0x8] sm:$0xff] %v530
        %535 = vst [vmem:[%s196 + $0x10] sm:$0xff] %v531
        %536 = vst [vmem:[%s196 + $0x18] sm:$0xff] %v532
        %s537 = sand.u32 %s89, 1
        %s538 = scalar_lea.sflag [#allocation4], %s537
        %s539 = sand.u32 %s89, 1
        %s540 = smul.addr %s539, 32
        %s541 = scalar_lea.vmem [#allocation7], %s540
        // Predicated region
        $region41: #{tpu_custom_call.1} parent=27 // pred_check
          %p542 = pneg %p99
        $region42: #{tpu_custom_call.1} parent=27 // pred_check_branch
          %544 = sbr.rel (%p542) target = $region44
        $region43: #{tpu_custom_call.1} parent=27 // pred_region
          %546 = vsyncadd %s538, 0
          %s547 = smul.addr %s24, 4
          %s548 = smul.addr %s547, 8
          %s549 = scalar_lea.hbm %s2, %s548
          %s550 = sshll.u32 %s541, 4
          %s551 = int_to_ptr.vmem [resolvable:$true] %s550
          %s552 = sshll.u32 %s549, 4
          %s553 = int_to_ptr.hbm [resolvable:$true] %s552
          %558 = dma.vmem_to_hbm [thread:$0]  %s551, 512, %s553, %s538, 256, 256, 16
        $region44: #{tpu_custom_call.1} parent=27 // pred_fallthru
          _
      $region28: #{tpu_custom_call.1} parent=5 // pred_fallthru
        _
      %p559 = scmp.le.s32.totalorder 2, %s15
      // Predicated region
      $region45: #{tpu_custom_call.1} parent=5 // pred_check
        %p560 = pneg %p559
      $region46: #{tpu_custom_call.1} parent=5 // pred_check_branch
        %562 = sbr.rel (%p560) target = $region48
      $region47: #{tpu_custom_call.1} parent=5 // pred_region
        %s563 = ssub.s32 %s15, 2
        // Predicated region
        $region49: #{tpu_custom_call.1} parent=47 // pred_check
          %p564 = pneg %p105
        $region50: #{tpu_custom_call.1} parent=47 // pred_check_branch
          %566 = sbr.rel (%p564) target = $region52
        $region51: #{tpu_custom_call.1} parent=47 // pred_region
          %s567 = sand.u32 %s90, 1
          %s568 = scalar_lea.sflag [#allocation4], %s567
          %s569 = sand.u32 %s90, 1
          %s570 = smul.addr %s569, 32
          %s571 = scalar_lea.vmem [#allocation7], %s570
          %573 = dma.done %s568, 512
        $region52: #{tpu_custom_call.1} parent=47 // pred_fallthru
          _
      $region48: #{tpu_custom_call.1} parent=5 // pred_fallthru
        _
    $region6: #{tpu_custom_call.1} parent=1 // loop_footer
      %s19 = sadd.s32 1, %s15
    $region7: #{tpu_custom_call.1} parent=1 // loop_footer_branch
      %14 = sbr.rel target = $region3
    $region8: #{tpu_custom_call.1} parent=1 // loop_exit
      _
    %574 = vsyncpa [#allocation3], 1
    %s575 = scalar_lea.sflag [#allocation3], 1
    %576 = vsyncpa %s575, 1
    %577 = vsyncpa [#allocation6], 1
    %s578 = scalar_lea.sflag [#allocation6], 1
    %579 = vsyncpa %s578, 1
    %580 = vsyncpa [#allocation4], 1
    %s581 = scalar_lea.sflag [#allocation4], 1
    %582 = vsyncpa %s581, 1

</llo_original>
